<compile_context>
chip_gen: v7x
topology: tpu7x:2x2x1
jax: 0.10.0
libtpu: 0.0.40
codegen_flags: <defaults>
</compile_context>

<pallas_src>
import jax
import jax.numpy as jnp
from jax.experimental import pallas as pl

# ---------------- model hyper-parameters (small, consistent with the module) --
N_BATCH = 2
CIN = 3                                   # RGB channels
H = W = 16                                # image spatial size
C1 = 8                                    # stem (conv1/bn1) channels
K_STEM, STRIDE_STEM, PAD_STEM = 7, 2, 3   # ResNet conv1 geometry
H1 = W1 = (H + 2 * PAD_STEM - K_STEM) // STRIDE_STEM + 1   # = 8
S_SPATIAL = H1 * W1                       # 64 spatial positions after the stem
M_ROWS = N_BATCH * S_SPATIAL              # 128 im2col rows
K_RAW = K_STEM * K_STEM * CIN             # 147 im2col contraction dim
K_PAD = ((K_RAW + 1 + 7) // 8) * 8        # 152: 147 taps + 1 bias col, sublane aligned
LATENT = 32                               # latent_dim
HP, WP = H1 // 2, W1 // 2                 # MaxPool2d(2) output spatial dims
AUX_DIM = HP * WP                         # 16  (aux_latent_dim for the bn1 hook)
NP = N_BATCH * AUX_DIM                    # 32 pooled pixels total
HIDDEN = 64
MEAS_DIM = 7
IN_DIM = LATENT + AUX_DIM + MEAS_DIM      # 55 (proprioception used)
OUT_DIM = 7

# --- row offsets inside the packed 64-lane FC slab ---------------------------
ROW_W0A = 0                               # (NP, HIDDEN)       tiled aux rows of fc0
ROW_WPM = ROW_W0A + NP                    # (C1+MEAS, HIDDEN)  [latent-folded feat ; meas]
ROW_B0 = ROW_WPM + C1 + MEAS_DIM          # (1, HIDDEN)        fc0 bias (+ folded latent_b)
ROW_W1 = ROW_B0 + 1                       # (HIDDEN, HIDDEN)   fc1 weight padded to 64 lanes
ROW_B1 = ROW_W1 + HIDDEN                  # (1, HIDDEN)        fc1 bias padded
SLAB64_ROWS = ROW_B1 + 1                  # 113


# ------------------------------ fused Pallas kernel ---------------------------
def _fused_forward_kernel(patches_ref, meas_ref, w_ext_ref,
                          slab64_ref, slab128_ref, o_ref):
    f32 = jnp.float32

    # Stem: conv1(7x7,s2,p3, bias-free) + bn1 (eval, folded) + merged aux 1x1
    # conv (column C1) + folded biases (ones column in patches), as ONE bf16
    # MXU matmul with f32 accumulation.
    stem = jnp.dot(patches_ref[...], w_ext_ref[...],
                   preferred_element_type=f32)                         # (M, C1+1) f32

    relu1 = jnp.maximum(stem[:, :C1], 0.0)       # trunk path (post-bn1 relu)
    aux = stem[:, C1:C1 + 1]                     # bn1 hook -> aux 1x1 conv, (M, 1)

    # Selector slab (128 lanes): rows 0:N = global-average-pool (1/64 on own-
    # batch rows), rows N:2N = per-batch selector over the NP pooled pixels.
    gap = slab128_ref[0:N_BATCH, :]                                    # (N, M)
    e2 = slab128_ref[N_BATCH:2 * N_BATCH, 0:NP]                        # (N, NP)

    # TODO(synk): pretrained ResNet-50 layers1-4/avgpool/fc replaced by this
    #             relu -> global-average-pool surrogate; the latent linear is
    #             folded into fc0 below (exact only while the head is affine).
    pooled = jnp.dot(gap, relu1, preferred_element_type=f32)           # (N, C1)

    # aux_net MaxPool2d(2): rows were pre-permuted window-major, so the four
    # elements of every 2x2 window are four 8-aligned 32-row blocks -> VPU max.
    vmax = jnp.maximum(jnp.maximum(aux[0 * NP:1 * NP], aux[1 * NP:2 * NP]),
                       jnp.maximum(aux[2 * NP:3 * NP], aux[3 * NP:4 * NP]))  # (NP, 1)

    # FC-weight slab (64 lanes), carved with static slices (no extra DMAs).
    w0a = slab64_ref[ROW_W0A:ROW_W0A + NP, :]                          # (NP, HIDDEN)
    wpm = slab64_ref[ROW_WPM:ROW_WPM + C1 + MEAS_DIM, :]               # (C1+MEAS, HIDDEN)
    b0 = slab64_ref[ROW_B0:ROW_B0 + 1, :]                              # (1, HIDDEN)
    w1 = slab64_ref[ROW_W1:ROW_W1 + HIDDEN, :]                         # (HIDDEN, HIDDEN)
    b1 = slab64_ref[ROW_B1:ROW_B1 + 1, :]                              # (1, HIDDEN)

    # fc0: concat([features, aux_flat, measurement]) realized as
    #   [pooled | meas] @ [W_pf ; W_meas]  +  e2 @ (vmax * tiled aux rows)  + b0
    aux_h = jnp.dot(e2, vmax * w0a, preferred_element_type=f32)        # (N, HIDDEN)
    pm = jnp.concatenate([pooled, meas_ref[...]], axis=1)              # (N, C1+MEAS)
    h0 = jnp.maximum(jnp.dot(pm, wpm, preferred_element_type=f32) + aux_h + b0, 0.0)

    # fc1 + relu (reference applies relu after EVERY fc layer, incl. the last).
    out = jnp.dot(h0, w1, preferred_element_type=f32) + b1             # (N, HIDDEN)
    o_ref[...] = jnp.maximum(out, 0.0)[:, :OUT_DIM].astype(o_ref.dtype)  # (N, 7)


def fused_forward(patches_bf16, meas, ops):
    # Single pallas_call, NO grid (per review: each grid step costs ~0.35 us of
    # bookkeeping, exceeding the whole kernel at these sizes).  Total live data
    # is < 0.1 MiB -- far under VMEM on v5e/v6e (128 MiB) and v7x (64 MiB) --
    # so every operand is staged whole in VMEM with default full-array blocks.
    return pl.pallas_call(
        _fused_forward_kernel,
        out_shape=jax.ShapeDtypeStruct((N_BATCH, OUT_DIM), jnp.float32),
    )(patches_bf16, meas, ops["w_ext"], ops["slab64"], ops["slab128"])


# ------------------------------- glue (plain JAX) -----------------------------
def im2col(x_nhwc, k, stride, pad):
    """Extract kxk patches with stride/pad; returns (N*Ho*Wo, k*k*C)."""
    N, Hh, Ww, C = x_nhwc.shape
    xp = jnp.pad(x_nhwc, ((0, 0), (pad, pad), (pad, pad), (0, 0)))
    Ho = (Hh + 2 * pad - k) // stride + 1
    Wo = (Ww + 2 * pad - k) // stride + 1
    cols = []
    for i in range(k):
        for j in range(k):
            cols.append(xp[:, i:i + stride * Ho:stride, j:j + stride * Wo:stride, :])
    patches = jnp.stack(cols, axis=3)                 # (N, Ho, Wo, k*k, C)
    return patches.reshape(N * Ho * Wo, k * k * C)


def _row_perm():
    """Window-major im2col row order: r = d*NP + (n*AUX_DIM + hp*WP + wp),
    where d in 0..3 is the 2x2-window element (dh,dw)."""
    r = jnp.arange(M_ROWS)
    d, q = r // NP, r % NP
    n, p = q // AUX_DIM, q % AUX_DIM
    hp, wp = p // WP, p % WP
    dh, dw = d // 2, d % 2
    return n * S_SPATIAL + (2 * hp + dh) * W1 + (2 * wp + dw)


ROW_PERM = _row_perm()


def init_params(key):
    ks = jax.random.split(key, 12)
    p = {}
    p["conv1_w"] = 0.05 * jax.random.normal(ks[0], (K_STEM, K_STEM, CIN, C1), jnp.float32)
    p["bn1_gamma"] = 1.0 + 0.1 * jax.random.normal(ks[1], (C1,), jnp.float32)
    p["bn1_beta"] = 0.1 * jax.random.normal(ks[2], (C1,), jnp.float32)
    p["bn1_mean"] = 0.1 * jax.random.normal(ks[3], (C1,), jnp.float32)
    p["bn1_var"] = jnp.abs(jax.random.normal(ks[4], (C1,), jnp.float32)) + 0.5
    p["latent_w"] = 0.1 * jax.random.normal(ks[5], (C1, LATENT), jnp.float32)
    p["latent_b"] = 0.01 * jax.random.normal(ks[6], (LATENT,), jnp.float32)
    p["aux_w"] = 0.1 * jax.random.normal(ks[7], (C1, 1), jnp.float32)   # Conv2d(C1->1, k=1)
    p["aux_b"] = 0.01 * jax.random.normal(ks[8], (1,), jnp.float32)
    p["fc0_w"] = 0.05 * jax.random.normal(ks[9], (IN_DIM, HIDDEN), jnp.float32)
    p["fc0_b"] = 0.01 * jax.random.normal(ks[10], (HIDDEN,), jnp.float32)
    p["fc1_w"] = 0.05 * jax.random.normal(ks[11], (HIDDEN, OUT_DIM), jnp.float32)
    p["fc1_b"] = jnp.zeros((OUT_DIM,), jnp.float32)
    return p


def prepare_operands(params):
    """One-time weight prep: BN fold, aux-conv merge, bias fold, latent->fc0
    fold, selector matrices, and packing everything into 2 constant slabs."""
    f32 = jnp.float32

    # Stem: fold bn1 (eval) into conv1, merge aux 1x1 conv as output column C1,
    # and fold the combined bias into weight row K_RAW (patches carry 1.0 there).
    w2d = params["conv1_w"].reshape(K_RAW, C1)
    scale = params["bn1_gamma"] / jnp.sqrt(params["bn1_var"] + 1e-5)
    shift = params["bn1_beta"] - params["bn1_mean"] * scale
    w_bn = w2d * scale[None, :]                                   # (K_RAW, C1)
    w_aux_col = w_bn @ params["aux_w"]                            # (K_RAW, 1)
    b_aux = shift @ params["aux_w"] + params["aux_b"]             # (1,)
    w_ext = jnp.concatenate([w_bn, w_aux_col], axis=1)            # (K_RAW, C1+1)
    bias_row = jnp.concatenate([shift, b_aux])[None, :]           # (1, C1+1)
    w_ext = jnp.concatenate(
        [w_ext, bias_row, jnp.zeros((K_PAD - K_RAW - 1, C1 + 1), f32)], axis=0)
    w_ext = w_ext.astype(jnp.bfloat16)                            # MXU-native stem input

    # Selector slab (128 lanes): GAP rows (1/64 on own-batch rows, window-major
    # order) + per-batch selector over the NP pooled aux pixels.
    r = jnp.arange(M_ROWS)
    batch_of_row = (r % NP) // AUX_DIM
    gap = (batch_of_row[None, :] ==
           jnp.arange(N_BATCH)[:, None]).astype(f32) / S_SPATIAL  # (N, M)
    q = jnp.arange(NP)
    e2 = (q[None, :] // AUX_DIM ==
          jnp.arange(N_BATCH)[:, None]).astype(f32)               # (N, NP)
    slab128 = jnp.concatenate(
        [gap, jnp.pad(e2, ((0, 0), (0, M_ROWS - NP)))], axis=0)   # (2N, M)

    # FC slab (64 lanes): latent head folded into fc0, fc0 split by input
    # block, fc1 zero-padded to 64 output lanes (exact; extra lanes discarded).
    w0 = params["fc0_w"]                                          # (IN_DIM, HIDDEN)
    w0_feat = w0[:LATENT]
    w0_aux = w0[LATENT:LATENT + AUX_DIM]
    w0_meas = w0[LATENT + AUX_DIM:]
    w_pf = params["latent_w"] @ w0_feat                           # (C1, HIDDEN)
    b0p = params["fc0_b"] + params["latent_b"] @ w0_feat          # (HIDDEN,)
    w0a_rep = jnp.tile(w0_aux, (N_BATCH, 1))                      # (NP, HIDDEN)
    wpm = jnp.concatenate([w_pf, w0_meas], axis=0)                # (C1+MEAS, HIDDEN)
    w1_pad = jnp.pad(params["fc1_w"], ((0, 0), (0, HIDDEN - OUT_DIM)))
    b1_pad = jnp.pad(params["fc1_b"], (0, HIDDEN - OUT_DIM))[None, :]
    slab64 = jnp.concatenate(
        [w0a_rep, wpm, b0p[None, :], w1_pad, b1_pad], axis=0).astype(f32)
    assert slab64.shape == (SLAB64_ROWS, HIDDEN)

    return {"w_ext": w_ext, "slab64": slab64, "slab128": slab128.astype(f32)}


def forward(ops, img_nchw, depth_nchw, self_measurement):
    """Mirrors NaiveObjectStateEstimator.forward (use_depth=False, proprioception on)."""
    del depth_nchw  # use_depth=False in this configuration -> depth branch inactive
    img = jnp.transpose(img_nchw, (0, 2, 3, 1)).astype(jnp.float32)   # NCHW -> NHWC
    patches = im2col(img, K_STEM, STRIDE_STEM, PAD_STEM)[ROW_PERM]    # (M, K_RAW) window-major
    # Ones column folds the stem bias into the matmul; zero-pad to K_PAD; bf16
    # halves the dominant DMA and feeds the MXU natively (f32 accumulation).
    # TODO(synk): build the im2col patches inside the kernel from the padded
    #             image to eliminate this wrapper-side HBM round-trip entirely.
    patches = jnp.concatenate(
        [patches,
         jnp.ones((M_ROWS, 1), jnp.float32),
         jnp.zeros((M_ROWS, K_PAD - K_RAW - 1), jnp.float32)],
        axis=1).astype(jnp.bfloat16)
    return fused_forward(patches, self_measurement.astype(jnp.float32), ops)


if __name__ == "__main__":
    key = jax.random.PRNGKey(0)
    kimg, kdepth, kmeas, kparam = jax.random.split(key, 4)
    img = jax.random.normal(kimg, (N_BATCH, CIN, H, W), jnp.float32)     # (N, C, H, W)
    depth = jax.random.normal(kdepth, (N_BATCH, 1, H, W), jnp.float32)   # (N, 1, H, W)
    meas = jax.random.normal(kmeas, (N_BATCH, MEAS_DIM), jnp.float32)    # (N, 7)
    params = init_params(kparam)
    ops = prepare_operands(params)   # one-time weight prep (folds, merges, slab packing)

    out = jax.jit(forward)(ops, img, depth, meas)
    out = jax.block_until_ready(out)
    assert out.shape == (N_BATCH, OUT_DIM), out.shape
    assert out.dtype == jnp.float32
    print("KERNEL_OK")
</pallas_src>

<mosaic_0001>
module attributes {stable_mosaic.version = 11 : i64} {
  func.func @_fused_forward_kernel(%arg0: memref<128x152xbf16, #tpu.memory_space<vmem>>, %arg1: memref<2x7xf32, #tpu.memory_space<vmem>>, %arg2: memref<152x9xbf16, #tpu.memory_space<vmem>>, %arg3: memref<113x64xf32, #tpu.memory_space<vmem>>, %arg4: memref<4x128xf32, #tpu.memory_space<vmem>>, %arg5: memref<2x7xf32, #tpu.memory_space<vmem>>) attributes {dimension_semantics = [], scalar_prefetch = 0 : i64, scratch_operands = 0 : i64, tpu.core_type = #tpu.core_type<tc>} {
    %c0 = arith.constant 0 : index
    %c0_0 = arith.constant 0 : index
    %0 = vector.load %arg0[%c0, %c0_0] : memref<128x152xbf16, #tpu.memory_space<vmem>>, vector<128x152xbf16>
    %c0_1 = arith.constant 0 : index
    %c0_2 = arith.constant 0 : index
    %1 = vector.load %arg2[%c0_1, %c0_2] : memref<152x9xbf16, #tpu.memory_space<vmem>>, vector<152x9xbf16>
    %cst = arith.constant dense<0.000000e+00> : vector<128x9xf32>
    %2 = tpu.matmul %0, %1, %cst {dimension_numbers = #tpu.dot_dimension_numbers<[1], [0], [0], [1], [0, 0, 1, 1], [], []>} : vector<128x152xbf16>, vector<152x9xbf16>, vector<128x9xf32> -> vector<128x9xf32>
    %3 = vector.extract_strided_slice %2 {offsets = [0, 0], sizes = [128, 8], strides = [1, 1]} : vector<128x9xf32> to vector<128x8xf32>
    %cst_3 = arith.constant 0.000000e+00 : f32
    %4 = vector.broadcast %cst_3 : f32 to vector<128x8xf32>
    %5 = arith.maximumf %3, %4 : vector<128x8xf32>
    %6 = vector.extract_strided_slice %2 {offsets = [0, 8], sizes = [128, 1], strides = [1, 1]} : vector<128x9xf32> to vector<128x1xf32>
    %c0_4 = arith.constant 0 : index
    %c0_5 = arith.constant 0 : index
    %7 = vector.load %arg4[%c0_4, %c0_5] : memref<4x128xf32, #tpu.memory_space<vmem>>, vector<2x128xf32>
    %c2 = arith.constant 2 : index
    %c0_6 = arith.constant 0 : index
    %8 = vector.load %arg4[%c2, %c0_6] : memref<4x128xf32, #tpu.memory_space<vmem>>, vector<2x32xf32>
    %cst_7 = arith.constant dense<0.000000e+00> : vector<2x8xf32>
    %9 = tpu.matmul %7, %5, %cst_7 {dimension_numbers = #tpu.dot_dimension_numbers<[1], [0], [0], [1], [0, 0, 1, 1], [], []>} : vector<2x128xf32>, vector<128x8xf32>, vector<2x8xf32> -> vector<2x8xf32>
    %10 = vector.extract_strided_slice %6 {offsets = [0, 0], sizes = [32, 1], strides = [1, 1]} : vector<128x1xf32> to vector<32x1xf32>
    %11 = vector.extract_strided_slice %6 {offsets = [32, 0], sizes = [32, 1], strides = [1, 1]} : vector<128x1xf32> to vector<32x1xf32>
    %12 = arith.maximumf %10, %11 : vector<32x1xf32>
    %13 = vector.extract_strided_slice %6 {offsets = [64, 0], sizes = [32, 1], strides = [1, 1]} : vector<128x1xf32> to vector<32x1xf32>
    %14 = vector.extract_strided_slice %6 {offsets = [96, 0], sizes = [32, 1], strides = [1, 1]} : vector<128x1xf32> to vector<32x1xf32>
    %15 = arith.maximumf %13, %14 : vector<32x1xf32>
    %16 = arith.maximumf %12, %15 : vector<32x1xf32>
    %c0_8 = arith.constant 0 : index
    %c0_9 = arith.constant 0 : index
    %17 = vector.load %arg3[%c0_8, %c0_9] : memref<113x64xf32, #tpu.memory_space<vmem>>, vector<32x64xf32>
    %c32 = arith.constant 32 : index
    %c0_10 = arith.constant 0 : index
    %18 = vector.load %arg3[%c32, %c0_10] : memref<113x64xf32, #tpu.memory_space<vmem>>, vector<15x64xf32>
    %c47 = arith.constant 47 : index
    %c0_11 = arith.constant 0 : index
    %19 = vector.load %arg3[%c47, %c0_11] : memref<113x64xf32, #tpu.memory_space<vmem>>, vector<1x64xf32>
    %c48 = arith.constant 48 : index
    %c0_12 = arith.constant 0 : index
    %20 = vector.load %arg3[%c48, %c0_12] : memref<113x64xf32, #tpu.memory_space<vmem>>, vector<64x64xf32>
    %c112 = arith.constant 112 : index
    %c0_13 = arith.constant 0 : index
    %21 = vector.load %arg3[%c112, %c0_13] : memref<113x64xf32, #tpu.memory_space<vmem>>, vector<1x64xf32>
    %22 = vector.broadcast %16 : vector<32x1xf32> to vector<32x64xf32>
    %23 = arith.mulf %22, %17 : vector<32x64xf32>
    %cst_14 = arith.constant dense<0.000000e+00> : vector<2x64xf32>
    %24 = tpu.matmul %8, %23, %cst_14 {dimension_numbers = #tpu.dot_dimension_numbers<[1], [0], [0], [1], [0, 0, 1, 1], [], []>} : vector<2x32xf32>, vector<32x64xf32>, vector<2x64xf32> -> vector<2x64xf32>
    %c0_15 = arith.constant 0 : index
    %c0_16 = arith.constant 0 : index
    %25 = vector.load %arg1[%c0_15, %c0_16] : memref<2x7xf32, #tpu.memory_space<vmem>>, vector<2x7xf32>
    %26 = tpu.concatenate %9, %25 in 1 : vector<2x8xf32>, vector<2x7xf32> -> vector<2x15xf32>
    %cst_17 = arith.constant dense<0.000000e+00> : vector<2x64xf32>
    %27 = tpu.matmul %26, %18, %cst_17 {dimension_numbers = #tpu.dot_dimension_numbers<[1], [0], [0], [1], [0, 0, 1, 1], [], []>} : vector<2x15xf32>, vector<15x64xf32>, vector<2x64xf32> -> vector<2x64xf32>
    %28 = arith.addf %27, %24 : vector<2x64xf32>
    %29 = vector.broadcast %19 : vector<1x64xf32> to vector<2x64xf32>
    %30 = arith.addf %28, %29 : vector<2x64xf32>
    %cst_18 = arith.constant 0.000000e+00 : f32
    %31 = vector.broadcast %cst_18 : f32 to vector<2x64xf32>
    %32 = arith.maximumf %30, %31 : vector<2x64xf32>
    %cst_19 = arith.constant dense<0.000000e+00> : vector<2x64xf32>
    %33 = tpu.matmul %32, %20, %cst_19 {dimension_numbers = #tpu.dot_dimension_numbers<[1], [0], [0], [1], [0, 0, 1, 1], [], []>} : vector<2x64xf32>, vector<64x64xf32>, vector<2x64xf32> -> vector<2x64xf32>
    %34 = vector.broadcast %21 : vector<1x64xf32> to vector<2x64xf32>
    %35 = arith.addf %33, %34 : vector<2x64xf32>
    %cst_20 = arith.constant 0.000000e+00 : f32
    %36 = vector.broadcast %cst_20 : f32 to vector<2x64xf32>
    %37 = arith.maximumf %35, %36 : vector<2x64xf32>
    %38 = vector.extract_strided_slice %37 {offsets = [0, 0], sizes = [2, 7], strides = [1, 1]} : vector<2x64xf32> to vector<2x7xf32>
    %c0_21 = arith.constant 0 : index
    %c0_22 = arith.constant 0 : index
    %39 = vector.load %arg5[%c0_21, %c0_22] : memref<2x7xf32, #tpu.memory_space<vmem>>, vector<2x7xf32>
    tpu.vector_store %arg5[%c0_21, %c0_22], %38 {strides = array<i32>} : memref<2x7xf32, #tpu.memory_space<vmem>>, vector<2x7xf32>,
    return
  }
}

</mosaic_0001>

<llo_original>
// kernel: forward.1
$region0: #{forward.1}
  #allocation0 [shape = 'u32[]', space=smem, size = 0x4, offset = 0x4, fixed_abs, tag = 'smem constant byte address 0x4 - core index']
  #allocation1 [shape = 'u32[144,128]{1,0:T(1,128)}', space=vmem, size = 0x12000, scoped, tag = 'internal scratch']
  %s0 = inlined_call_operand.vmem [shape: bf16[128,152], index: 0, kind: input, shape index: {}]
  %s1 = inlined_call_operand.vmem [shape: f32[2,7], index: 1, kind: input, shape index: {}]
  %s2 = inlined_call_operand.vmem [shape: bf16[152,9], index: 2, kind: input, shape index: {}]
  %s3 = inlined_call_operand.vmem [shape: f32[113,64], index: 3, kind: input, shape index: {}]
  %s4 = inlined_call_operand.vmem [shape: f32[4,128], index: 4, kind: input, shape index: {}]
  %s5 = inlined_call_operand.hbm [shape: f32[2,7], index: 5, kind: output, shape index: {}]
  %s6 = sld [smem:[#allocation0]]
  $region30: #{forward.1} parent=0
    _
  %s8 = ssub.s32 1, %s6
  %s9 = scalar_select 0, %s8, %s6
  $region1: #{forward.1} parent=0
    #allocation2 [shape = 'u8[1024]{0}', space=vmem, size = 0x400, scoped, tag = 'output window, operand 0, single buffered']
    #allocation3 [shape = 's32[1]{0}', space=sflag, size = 0x4, scoped, tag = 'scoped memory for forward.1']
    %10 = vsyncpa [#allocation3], 0
    // Predicated region
    $region2: #{forward.1} parent=1 // pred_check
      _
    $region3: #{forward.1} parent=1 // pred_check_branch
      %12 = sbr.rel (0) target = $region5
    $region4: #{forward.1} parent=1 // pred_region
      _
    $region5: #{forward.1} parent=1 // pred_fallthru
      _
    // Predicated region
    $region6: #{forward.1} parent=1 // pred_check
      _
    $region7: #{forward.1} parent=1 // pred_check_branch
      %14 = sbr.rel (0) target = $region9
    $region8: #{forward.1} parent=1 // pred_region
      _
    $region9: #{forward.1} parent=1 // pred_fallthru
      _
    // Predicated region
    $region10: #{forward.1} parent=1 // pred_check
      _
    $region11: #{forward.1} parent=1 // pred_check_branch
      %16 = sbr.rel (0) target = $region13
    $region12: #{forward.1} parent=1 // pred_region
      _
    $region13: #{forward.1} parent=1 // pred_fallthru
      _
    // Predicated region
    $region14: #{forward.1} parent=1 // pred_check
      _
    $region15: #{forward.1} parent=1 // pred_check_branch
      %18 = sbr.rel (0) target = $region17
    $region16: #{forward.1} parent=1 // pred_region
      _
    $region17: #{forward.1} parent=1 // pred_fallthru
      _
    // Predicated region
    $region18: #{forward.1} parent=1 // pred_check
      _
    $region19: #{forward.1} parent=1 // pred_check_branch
      %20 = sbr.rel (0) target = $region21
    $region20: #{forward.1} parent=1 // pred_region
      _
    $region21: #{forward.1} parent=1 // pred_fallthru
      _
    %v22 = vld [vmem:[%s0] sm:$0xff]
    %v23 = vld [vmem:[%s0 + $0x8] sm:$0xff]
    %v24 = vld [vmem:[%s0 + $0x10] sm:$0xff]
    %v25 = vld [vmem:[%s0 + $0x18] sm:$0xff]
    %v26 = vld [vmem:[%s0 + $0x20] sm:$0xff]
    %v27 = vld [vmem:[%s0 + $0x28] sm:$0xff]
    %v28 = vld [vmem:[%s0 + $0x30] sm:$0xff]
    %v29 = vld [vmem:[%s0 + $0x38] sm:$0xff]
    %v30 = vld [vmem:[%s0 + $0x40] sm:$0xff]
    %v31 = vld [vmem:[%s0 + $0x48] sm:$0xff]
    %v32 = vld [vmem:[%s0 + $0x50] sm:$0xff]
    %v33 = vld [vmem:[%s0 + $0x58] sm:$0xff]
    %v34 = vld [vmem:[%s0 + $0x60] sm:$0xff]
    %v35 = vld [vmem:[%s0 + $0x68] sm:$0xff]
    %v36 = vld [vmem:[%s0 + $0x70] sm:$0xff]
    %v37 = vld [vmem:[%s0 + $0x78] sm:$0xff]
    %v38 = vld [vmem:[%s2] sm:$0xf]
    %v39 = vld [vmem:[%s2 + $0x4] sm:$0xf]
    %v40 = vld [vmem:[%s2 + $0x8] sm:$0xf]
    %v41 = vld [vmem:[%s2 + $0xc] sm:$0xf]
    %v42 = vld [vmem:[%s2 + $0x10] sm:$0xf]
    %v43 = vld [vmem:[%s2 + $0x14] sm:$0xf]
    %v44 = vld [vmem:[%s2 + $0x18] sm:$0xf]
    %v45 = vld [vmem:[%s2 + $0x1c] sm:$0xf]
    %v46 = vld [vmem:[%s2 + $0x20] sm:$0xf]
    %v47 = vld [vmem:[%s2 + $0x24] sm:$0xf]
    %v48 = vld [vmem:[%s2 + $0x28] sm:$0xf]
    %v49 = vld [vmem:[%s2 + $0x2c] sm:$0xf]
    %v50 = vld [vmem:[%s2 + $0x30] sm:$0xf]
    %v51 = vld [vmem:[%s2 + $0x34] sm:$0xf]
    %v52 = vld [vmem:[%s2 + $0x38] sm:$0xf]
    %v53 = vld [vmem:[%s2 + $0x3c] sm:$0xf]
    %v54 = vld [vmem:[%s2 + $0x40] sm:$0xf]
    %v55 = vld [vmem:[%s2 + $0x44] sm:$0xf]
    %v56 = vld [vmem:[%s2 + $0x48] sm:$0xf]
    %v73 = vunpack.c.l.b16 %v22
    %v74 = vunpack.c.h.b16 %v22
    %v75 = vunpack.c.l.b16 %v23
    %v76 = vunpack.c.h.b16 %v23
    %v77 = vunpack.c.l.b16 %v24
    %v78 = vunpack.c.h.b16 %v24
    %v79 = vunpack.c.l.b16 %v25
    %v80 = vunpack.c.h.b16 %v25
    %v81 = vunpack.c.l.b16 %v26
    %v82 = vunpack.c.h.b16 %v26
    %v83 = vunpack.c.l.b16 %v27
    %v84 = vunpack.c.h.b16 %v27
    %v85 = vunpack.c.l.b16 %v28
    %v86 = vunpack.c.h.b16 %v28
    %v87 = vunpack.c.l.b16 %v29
    %v88 = vunpack.c.h.b16 %v29
    %v89 = vunpack.c.l.b16 %v30
    %v90 = vunpack.c.h.b16 %v30
    %v91 = vunpack.c.l.b16 %v31
    %v92 = vunpack.c.h.b16 %v31
    %v93 = vunpack.c.l.b16 %v32
    %v94 = vunpack.c.h.b16 %v32
    %v95 = vunpack.c.l.b16 %v33
    %v96 = vunpack.c.h.b16 %v33
    %v97 = vunpack.c.l.b16 %v34
    %v98 = vunpack.c.h.b16 %v34
    %v99 = vunpack.c.l.b16 %v35
    %v100 = vunpack.c.h.b16 %v35
    %v101 = vunpack.c.l.b16 %v36
    %v102 = vunpack.c.h.b16 %v36
    %v103 = vunpack.c.l.b16 %v37
    %v104 = vunpack.c.h.b16 %v37
    %v105 = vpack.c.b16 %v75, %v73
    %v106 = vpack.c.b16 %v76, %v74
    %v107 = vpack.c.b16 %v79, %v77
    %v108 = vpack.c.b16 %v80, %v78
    %v109 = vpack.c.b16 %v83, %v81
    %v110 = vpack.c.b16 %v84, %v82
    %v111 = vpack.c.b16 %v87, %v85
    %v112 = vpack.c.b16 %v88, %v86
    %v113 = vpack.c.b16 %v91, %v89
    %v114 = vpack.c.b16 %v92, %v90
    %v115 = vpack.c.b16 %v95, %v93
    %v116 = vpack.c.b16 %v96, %v94
    %v117 = vpack.c.b16 %v99, %v97
    %v118 = vpack.c.b16 %v100, %v98
    %v119 = vpack.c.b16 %v103, %v101
    %v120 = vpack.c.b16 %v104, %v102
    %v148 = vunpack.c.l.b16 %v38
    %v149 = vunpack.c.l.b16 %v39
    %v150 = vunpack.c.l.b16 %v40
    %v151 = vunpack.c.l.b16 %v41
    %v152 = vunpack.c.l.b16 %v42
    %v153 = vunpack.c.l.b16 %v43
    %v154 = vunpack.c.l.b16 %v44
    %v155 = vunpack.c.l.b16 %v45
    %v156 = vunpack.c.l.b16 %v46
    %v157 = vunpack.c.l.b16 %v47
    %v158 = vunpack.c.l.b16 %v48
    %v159 = vunpack.c.l.b16 %v49
    %v160 = vunpack.c.l.b16 %v50
    %v161 = vunpack.c.l.b16 %v51
    %v162 = vunpack.c.l.b16 %v52
    %v163 = vunpack.c.l.b16 %v53
    %v164 = vunpack.c.l.b16 %v54
    %v165 = vunpack.c.l.b16 %v55
    %v166 = vunpack.c.l.b16 %v56
    %v167 = vpack.c.b16 %v149, %v148
    %v168 = vpack.c.b16 %v151, %v150
    %v169 = vpack.c.b16 %v153, %v152
    %v170 = vpack.c.b16 %v155, %v154
    %v171 = vpack.c.b16 %v157, %v156
    %v172 = vpack.c.b16 %v159, %v158
    %v173 = vpack.c.b16 %v161, %v160
    %v174 = vpack.c.b16 %v163, %v162
    %v175 = vpack.c.b16 %v165, %v164
    %v176 = vpack.c.b16 %v166, %v166
    %vm186 = vcmask 195584
    %v188 = vsel %vm186, %v106, 0
    %v191 = vsel %vm186, %v108, 0
    %v194 = vsel %vm186, %v110, 0
    %v197 = vsel %vm186, %v112, 0
    %v200 = vsel %vm186, %v114, 0
    %v203 = vsel %vm186, %v116, 0
    %v206 = vsel %vm186, %v118, 0
    %v209 = vsel %vm186, %v120, 0
    %vm211 = vcmask 1043456
    %v213 = vsel %vm211, %v176, 0
    %215 = vmatprep.subr.bf16.mxu0 0
    %216 = vmatpush1.bf16.msra.mxu0 %v167
    %217 = vmatprep.subr.bf16.mxu0 0
    %218 = vmatpush1.bf16.msra.mxu0 %v168
    %219 = vmatprep.subr.bf16.mxu0 0
    %220 = vmatpush1.bf16.msra.mxu0 %v169
    %221 = vmatprep.subr.bf16.mxu0 0
    %222 = vmatpush1.bf16.msra.mxu0 %v170
    %223 = vmatprep.subr.bf16.mxu0 0
    %224 = vmatpush1.bf16.msra.mxu0 %v171
    %225 = vmatprep.subr.bf16.mxu0 0
    %226 = vmatpush1.bf16.msra.mxu0 %v172
    %227 = vmatprep.subr.bf16.mxu0 0
    %228 = vmatpush1.bf16.msra.mxu0 %v173
    %229 = vmatprep.subr.bf16.mxu0 0
    %230 = vmatpush1.bf16.msra.mxu0 %v174
    %231 = vmatprep.subr.bf16.mxu0 0
    %232 = vmatpush1.bf16.msra.mxu0 %v175
    %233 = vmatprep.subr.bf16.mxu0 0
    %234 = vmatpush1.bf16.msra.mxu0 %v213
    %235 = vmatprep.subr.bf16.mxu0 0
    %236 = vmatpush1.bf16.msra.mxu0 0
    %237 = vmatprep.subr.bf16.mxu0 0
    %238 = vmatpush1.bf16.msra.mxu0 0
    %239 = vmatprep.subr.bf16.mxu0 0
    %240 = vmatpush1.bf16.msra.mxu0 0
    %241 = vmatprep.subr.bf16.mxu0 0
    %242 = vmatpush1.bf16.msra.mxu0 0
    %243 = vmatprep.subr.bf16.mxu0 0
    %244 = vmatpush1.bf16.msra.mxu0 0
    %245 = vmatprep.subr.bf16.mxu0 0
    %246 = vmatpush1.bf16.msra.mxu0 0
    %247 = vmatprep.mubr.bf16.mxu0 %v188
    %248 = vmatmul.mubr.bf16.gmra.mrb[0].mxu0 %v105
    %v249 = vpop.f32.mrb[0].mxu0
    %v250 = vadd.f32 0.0, %v249
    %v251 = vpop.f32.mrb[0].mxu0
    %v252 = vpop.f32.mrb[0].mxu0
    %v253 = vadd.f32 0.0, %v252
    %v254 = vpop.f32.mrb[0].mxu0
    %255 = vmatprep.mubr.bf16.mxu0 %v191
    %256 = vmatmul.mubr.bf16.gmra.mrb[0].mxu0 %v107
    %v257 = vpop.f32.mrb[0].mxu0
    %v258 = vadd.f32 0.0, %v257
    %v259 = vpop.f32.mrb[0].mxu0
    %v260 = vpop.f32.mrb[0].mxu0
    %v261 = vadd.f32 0.0, %v260
    %v262 = vpop.f32.mrb[0].mxu0
    %263 = vmatprep.mubr.bf16.mxu0 %v194
    %264 = vmatmul.mubr.bf16.gmra.mrb[0].mxu0 %v109
    %v265 = vpop.f32.mrb[0].mxu0
    %v266 = vadd.f32 0.0, %v265
    %v267 = vpop.f32.mrb[0].mxu0
    %v268 = vpop.f32.mrb[0].mxu0
    %v269 = vadd.f32 0.0, %v268
    %v270 = vpop.f32.mrb[0].mxu0
    %271 = vmatprep.mubr.bf16.mxu0 %v197
    %272 = vmatmul.mubr.bf16.gmra.mrb[0].mxu0 %v111
    %v273 = vpop.f32.mrb[0].mxu0
    %v274 = vadd.f32 0.0, %v273
    %v275 = vpop.f32.mrb[0].mxu0
    %v276 = vpop.f32.mrb[0].mxu0
    %v277 = vadd.f32 0.0, %v276
    %v278 = vpop.f32.mrb[0].mxu0
    %279 = vmatprep.mubr.bf16.mxu0 %v200
    %280 = vmatmul.mubr.bf16.gmra.mrb[0].mxu0 %v113
    %v281 = vpop.f32.mrb[0].mxu0
    %v282 = vadd.f32 0.0, %v281
    %v283 = vpop.f32.mrb[0].mxu0
    %v284 = vpop.f32.mrb[0].mxu0
    %v285 = vadd.f32 0.0, %v284
    %v286 = vpop.f32.mrb[0].mxu0
    %287 = vmatprep.mubr.bf16.mxu0 %v203
    %288 = vmatmul.mubr.bf16.gmra.mrb[0].mxu0 %v115
    %v289 = vpop.f32.mrb[0].mxu0
    %v290 = vadd.f32 0.0, %v289
    %v291 = vpop.f32.mrb[0].mxu0
    %v292 = vpop.f32.mrb[0].mxu0
    %v293 = vadd.f32 0.0, %v292
    %v294 = vpop.f32.mrb[0].mxu0
    %295 = vmatprep.mubr.bf16.mxu0 %v206
    %296 = vmatmul.mubr.bf16.gmra.mrb[0].mxu0 %v117
    %v297 = vpop.f32.mrb[0].mxu0
    %v298 = vadd.f32 0.0, %v297
    %v299 = vpop.f32.mrb[0].mxu0
    %v300 = vpop.f32.mrb[0].mxu0
    %v301 = vadd.f32 0.0, %v300
    %v302 = vpop.f32.mrb[0].mxu0
    %303 = vmatprep.mubr.bf16.mxu0 %v209
    %304 = vmatmul.mubr.bf16.gmra.mrb[0].mxu0 %v119
    %v305 = vpop.f32.mrb[0].mxu0
    %v306 = vadd.f32 0.0, %v305
    %v307 = vpop.f32.mrb[0].mxu0
    %v308 = vpop.f32.mrb[0].mxu0
    %v309 = vadd.f32 0.0, %v308
    %v310 = vpop.f32.mrb[0].mxu0
    %311 = vdwg.mxu0
    %v312 = vmax.f32 %v250, 0.0
    %v313 = vmax.f32 %v253, 0.0
    %v314 = vmax.f32 %v258, 0.0
    %v315 = vmax.f32 %v261, 0.0
    %v316 = vmax.f32 %v266, 0.0
    %v317 = vmax.f32 %v269, 0.0
    %v318 = vmax.f32 %v274, 0.0
    %v319 = vmax.f32 %v277, 0.0
    %v320 = vmax.f32 %v282, 0.0
    %v321 = vmax.f32 %v285, 0.0
    %v322 = vmax.f32 %v290, 0.0
    %v323 = vmax.f32 %v293, 0.0
    %v324 = vmax.f32 %v298, 0.0
    %v325 = vmax.f32 %v301, 0.0
    %v326 = vmax.f32 %v306, 0.0
    %v327 = vmax.f32 %v309, 0.0
    %v328 = vld [vmem:[%s4] sm:$0x3]
    %v329 = vld [vmem:[%s4 + $0x2] sm:$0x3]
    %330 = vmatprep.subr.mxu0 0.0
    %331 = vmatpush1.msra.mxu0 %v312
    %332 = vmatprep.subr.mxu0 0.0
    %333 = vmatpush1.msra.mxu0 %v313
    %334 = vmatprep.subr.mxu0 0.0
    %335 = vmatpush1.msra.mxu0 %v314
    %336 = vmatprep.subr.mxu0 0.0
    %337 = vmatpush1.msra.mxu0 %v315
    %338 = vmatprep.subr.mxu0 0.0
    %339 = vmatpush1.msra.mxu0 %v316
    %340 = vmatprep.subr.mxu0 0.0
    %341 = vmatpush1.msra.mxu0 %v317
    %342 = vmatprep.subr.mxu0 0.0
    %343 = vmatpush1.msra.mxu0 %v318
    %344 = vmatprep.subr.mxu0 0.0
    %345 = vmatpush1.msra.mxu0 %v319
    %346 = vmatprep.subr.mxu0 0.0
    %347 = vmatpush1.msra.mxu0 %v320
    %348 = vmatprep.subr.mxu0 0.0
    %349 = vmatpush1.msra.mxu0 %v321
    %350 = vmatprep.subr.mxu0 0.0
    %351 = vmatpush1.msra.mxu0 %v322
    %352 = vmatprep.subr.mxu0 0.0
    %353 = vmatpush1.msra.mxu0 %v323
    %354 = vmatprep.subr.mxu0 0.0
    %355 = vmatpush1.msra.mxu0 %v324
    %356 = vmatprep.subr.mxu0 0.0
    %357 = vmatpush1.msra.mxu0 %v325
    %358 = vmatprep.subr.mxu0 0.0
    %359 = vmatpush1.msra.mxu0 %v326
    %360 = vmatprep.subr.mxu0 0.0
    %361 = vmatpush1.msra.mxu0 %v327
    %362 = vmatprep.subr.mxu0 0.0
    %363 = vmatpush1.msra.mxu0 0.0
    %364 = vmatprep.subr.mxu0 0.0
    %365 = vmatpush1.msra.mxu0 0.0
    %366 = vmatprep.subr.mxu0 0.0
    %367 = vmatpush1.msra.mxu0 0.0
    %368 = vmatprep.subr.mxu0 0.0
    %369 = vmatpush1.msra.mxu0 0.0
    %370 = vmatprep.subr.mxu0 0.0
    %371 = vmatpush1.msra.mxu0 0.0
    %372 = vmatprep.subr.mxu0 0.0
    %373 = vmatpush1.msra.mxu0 0.0
    %374 = vmatprep.subr.mxu0 0.0
    %375 = vmatpush1.msra.mxu0 0.0
    %376 = vmatprep.subr.mxu0 0.0
    %377 = vmatpush1.msra.mxu0 0.0
    %378 = vmatprep.subr.mxu0 0.0
    %379 = vmatpush1.msra.mxu0 0.0
    %380 = vmatprep.subr.mxu0 0.0
    %381 = vmatpush1.msra.mxu0 0.0
    %382 = vmatprep.subr.mxu0 0.0
    %383 = vmatpush1.msra.mxu0 0.0
    %384 = vmatprep.subr.mxu0 0.0
    %385 = vmatpush1.msra.mxu0 0.0
    %386 = vmatprep.subr.mxu0 0.0
    %387 = vmatpush1.msra.mxu0 0.0
    %388 = vmatprep.subr.mxu0 0.0
    %389 = vmatpush1.msra.mxu0 0.0
    %390 = vmatprep.subr.mxu0 0.0
    %391 = vmatpush1.msra.mxu0 0.0
    %392 = vmatprep.subr.mxu0 0.0
    %393 = vmatpush1.msra.mxu0 0.0
    %394 = vmatprep.mubr.f32.mxu0 0.0
    %395 = vmatmul.mubr.f32.gmra.mrb[0].mxu0 %v328
    %v396 = vpop.f32.mrb[0].mxu0
    %v397 = vadd.f32 0.0, %v396
    %v398 = vpop.f32.mrb[0].mxu0
    %399 = vdwg.mxu0
    %v400 = vmax.f32 %v250, %v266
    %v401 = vmax.f32 %v253, %v269
    %v402 = vmax.f32 %v258, %v274
    %v403 = vmax.f32 %v261, %v277
    %v404 = vmax.f32 %v282, %v298
    %v405 = vmax.f32 %v285, %v301
    %v406 = vmax.f32 %v290, %v306
    %v407 = vmax.f32 %v293, %v309
    %v408 = vmax.f32 %v400, %v404
    %v409 = vmax.f32 %v401, %v405
    %v410 = vmax.f32 %v402, %v406
    %v411 = vmax.f32 %v403, %v407
    %v412 = vld [vmem:[%s3] sm:$0xff]
    %v413 = vld [vmem:[%s3 + $0x8] sm:$0xff]
    %v414 = vld [vmem:[%s3 + $0x10] sm:$0xff]
    %v415 = vld [vmem:[%s3 + $0x18] sm:$0xff]
    %v416 = vld [vmem:[%s3 + $0x20] sm:$0xff]
    %v417 = vld [vmem:[%s3 + $0x28] sm:$0x7f]
    %v418 = vld [vmem:[%s3 + $0x2f] sm:$0x1]
    %v419 = vld [vmem:[%s3 + $0x30] sm:$0xff]
    %v420 = vld [vmem:[%s3 + $0x38] sm:$0xff]
    %v421 = vld [vmem:[%s3 + $0x40] sm:$0xff]
    %v422 = vld [vmem:[%s3 + $0x48] sm:$0xff]
    %v423 = vld [vmem:[%s3 + $0x50] sm:$0xff]
    %v424 = vld [vmem:[%s3 + $0x58] sm:$0xff]
    %v425 = vld [vmem:[%s3 + $0x60] sm:$0xff]
    %v426 = vld [vmem:[%s3 + $0x68] sm:$0xff]
    %v427 = vld [vmem:[%s3 + $0x70] sm:$0x1]
    %429 = vset.pattern.permute.xlu0 8
    %430 = vperm.xlu0 %429, %v408
    %v431 = vpop.permute.xlu0 %430
    %434 = vset.pattern.permute.xlu0 8
    %435 = vperm.xlu0 %434, %v409
    %v436 = vpop.permute.xlu0 %435
    %439 = vset.pattern.permute.xlu0 8
    %440 = vperm.xlu0 %439, %v410
    %v441 = vpop.permute.xlu0 %440
    %444 = vset.pattern.permute.xlu0 8
    %445 = vperm.xlu0 %444, %v411
    %v446 = vpop.permute.xlu0 %445
    %v448 = vmul.f32 %v431, %v412
    %v449 = vmul.f32 %v436, %v413
    %v450 = vmul.f32 %v441, %v414
    %v451 = vmul.f32 %v446, %v415
    %vm452 = vcmask 261120
    %v454 = vsel %vm452, %v329, 0
    %456 = vmatprep.subr.mxu0 0.0
    %457 = vmatpush1.msra.mxu0 %v448
    %458 = vmatprep.subr.mxu0 0.0
    %459 = vmatpush1.msra.mxu0 %v449
    %460 = vmatprep.subr.mxu0 0.0
    %461 = vmatpush1.msra.mxu0 %v450
    %462 = vmatprep.subr.mxu0 0.0
    %463 = vmatpush1.msra.mxu0 %v451
    %464 = vmatprep.subr.mxu0 0.0
    %465 = vmatpush1.msra.mxu0 0.0
    %466 = vmatprep.subr.mxu0 0.0
    %467 = vmatpush1.msra.mxu0 0.0
    %468 = vmatprep.subr.mxu0 0.0
    %469 = vmatpush1.msra.mxu0 0.0
    %470 = vmatprep.subr.mxu0 0.0
    %471 = vmatpush1.msra.mxu0 0.0
    %472 = vmatprep.subr.mxu0 0.0
    %473 = vmatpush1.msra.mxu0 0.0
    %474 = vmatprep.subr.mxu0 0.0
    %475 = vmatpush1.msra.mxu0 0.0
    %476 = vmatprep.subr.mxu0 0.0
    %477 = vmatpush1.msra.mxu0 0.0
    %478 = vmatprep.subr.mxu0 0.0
    %479 = vmatpush1.msra.mxu0 0.0
    %480 = vmatprep.subr.mxu0 0.0
    %481 = vmatpush1.msra.mxu0 0.0
    %482 = vmatprep.subr.mxu0 0.0
    %483 = vmatpush1.msra.mxu0 0.0
    %484 = vmatprep.subr.mxu0 0.0
    %485 = vmatpush1.msra.mxu0 0.0
    %486 = vmatprep.subr.mxu0 0.0
    %487 = vmatpush1.msra.mxu0 0.0
    %488 = vmatprep.subr.mxu0 0.0
    %489 = vmatpush1.msra.mxu0 0.0
    %490 = vmatprep.subr.mxu0 0.0
    %491 = vmatpush1.msra.mxu0 0.0
    %492 = vmatprep.subr.mxu0 0.0
    %493 = vmatpush1.msra.mxu0 0.0
    %494 = vmatprep.subr.mxu0 0.0
    %495 = vmatpush1.msra.mxu0 0.0
    %496 = vmatprep.subr.mxu0 0.0
    %497 = vmatpush1.msra.mxu0 0.0
    %498 = vmatprep.subr.mxu0 0.0
    %499 = vmatpush1.msra.mxu0 0.0
    %500 = vmatprep.subr.mxu0 0.0
    %501 = vmatpush1.msra.mxu0 0.0
    %502 = vmatprep.subr.mxu0 0.0
    %503 = vmatpush1.msra.mxu0 0.0
    %504 = vmatprep.subr.mxu0 0.0
    %505 = vmatpush1.msra.mxu0 0.0
    %506 = vmatprep.subr.mxu0 0.0
    %507 = vmatpush1.msra.mxu0 0.0
    %508 = vmatprep.subr.mxu0 0.0
    %509 = vmatpush1.msra.mxu0 0.0
    %510 = vmatprep.subr.mxu0 0.0
    %511 = vmatpush1.msra.mxu0 0.0
    %512 = vmatprep.subr.mxu0 0.0
    %513 = vmatpush1.msra.mxu0 0.0
    %514 = vmatprep.subr.mxu0 0.0
    %515 = vmatpush1.msra.mxu0 0.0
    %516 = vmatprep.subr.mxu0 0.0
    %517 = vmatpush1.msra.mxu0 0.0
    %518 = vmatprep.subr.mxu0 0.0
    %519 = vmatpush1.msra.mxu0 0.0
    %520 = vmatprep.mubr.f32.mxu0 0.0
    %521 = vmatmul.mubr.f32.gmra.mrb[0].mxu0 %v454
    %v522 = vpop.f32.mrb[0].mxu0
    %v523 = vadd.f32 0.0, %v522
    %v524 = vpop.f32.mrb[0].mxu0
    %525 = vdwg.mxu0
    %v526 = vld [vmem:[%s1] sm:$0x3]
    %528 = vrot.lane.b32.xlu0 %v526, 8
    %v529 = vpop.permute.xlu0 %528
    %vm531 = vcmask 64512
    %v532 = vsel %vm531, %v397, %v529
    %vm533 = vcmask 121856
    %v535 = vsel %vm533, %v532, 0
    %vm537 = vcmask 1046528
    %v539 = vsel %vm537, %v417, 0
    %541 = vmatprep.subr.mxu0 0.0
    %542 = vmatpush1.msra.mxu0 %v416
    %543 = vmatprep.subr.mxu0 0.0
    %544 = vmatpush1.msra.mxu0 %v539
    %545 = vmatprep.subr.mxu0 0.0
    %546 = vmatpush1.msra.mxu0 0.0
    %547 = vmatprep.subr.mxu0 0.0
    %548 = vmatpush1.msra.mxu0 0.0
    %549 = vmatprep.subr.mxu0 0.0
    %550 = vmatpush1.msra.mxu0 0.0
    %551 = vmatprep.subr.mxu0 0.0
    %552 = vmatpush1.msra.mxu0 0.0
    %553 = vmatprep.subr.mxu0 0.0
    %554 = vmatpush1.msra.mxu0 0.0
    %555 = vmatprep.subr.mxu0 0.0
    %556 = vmatpush1.msra.mxu0 0.0
    %557 = vmatprep.subr.mxu0 0.0
    %558 = vmatpush1.msra.mxu0 0.0
    %559 = vmatprep.subr.mxu0 0.0
    %560 = vmatpush1.msra.mxu0 0.0
    %561 = vmatprep.subr.mxu0 0.0
    %562 = vmatpush1.msra.mxu0 0.0
    %563 = vmatprep.subr.mxu0 0.0
    %564 = vmatpush1.msra.mxu0 0.0
    %565 = vmatprep.subr.mxu0 0.0
    %566 = vmatpush1.msra.mxu0 0.0
    %567 = vmatprep.subr.mxu0 0.0
    %568 = vmatpush1.msra.mxu0 0.0
    %569 = vmatprep.subr.mxu0 0.0
    %570 = vmatpush1.msra.mxu0 0.0
    %571 = vmatprep.subr.mxu0 0.0
    %572 = vmatpush1.msra.mxu0 0.0
    %573 = vmatprep.subr.mxu0 0.0
    %574 = vmatpush1.msra.mxu0 0.0
    %575 = vmatprep.subr.mxu0 0.0
    %576 = vmatpush1.msra.mxu0 0.0
    %577 = vmatprep.subr.mxu0 0.0
    %578 = vmatpush1.msra.mxu0 0.0
    %579 = vmatprep.subr.mxu0 0.0
    %580 = vmatpush1.msra.mxu0 0.0
    %581 = vmatprep.subr.mxu0 0.0
    %582 = vmatpush1.msra.mxu0 0.0
    %583 = vmatprep.subr.mxu0 0.0
    %584 = vmatpush1.msra.mxu0 0.0
    %585 = vmatprep.subr.mxu0 0.0
    %586 = vmatpush1.msra.mxu0 0.0
    %587 = vmatprep.subr.mxu0 0.0
    %588 = vmatpush1.msra.mxu0 0.0
    %589 = vmatprep.subr.mxu0 0.0
    %590 = vmatpush1.msra.mxu0 0.0
    %591 = vmatprep.subr.mxu0 0.0
    %592 = vmatpush1.msra.mxu0 0.0
    %593 = vmatprep.subr.mxu0 0.0
    %594 = vmatpush1.msra.mxu0 0.0
    %595 = vmatprep.subr.mxu0 0.0
    %596 = vmatpush1.msra.mxu0 0.0
    %597 = vmatprep.subr.mxu0 0.0
    %598 = vmatpush1.msra.mxu0 0.0
    %599 = vmatprep.subr.mxu0 0.0
    %600 = vmatpush1.msra.mxu0 0.0
    %601 = vmatprep.subr.mxu0 0.0
    %602 = vmatpush1.msra.mxu0 0.0
    %603 = vmatprep.subr.mxu0 0.0
    %604 = vmatpush1.msra.mxu0 0.0
    %605 = vmatprep.mubr.f32.mxu0 0.0
    %606 = vmatmul.mubr.f32.gmra.mrb[0].mxu0 %v535
    %v607 = vpop.f32.mrb[0].mxu0
    %v608 = vadd.f32 %v523, %v607
    %v609 = vpop.f32.mrb[0].mxu0
    %610 = vdwg.mxu0
    %v611 = vlaneseq
    %v612 = vshrl.u32 %v611, 7
    %v613 = vsub.s32 0, %v612
    %v614 = vrot.slane %v418, %v613
    %v615 = vadd.f32 %v608, %v614
    %v616 = vmax.f32 %v615, 0.0
    %v617 = vlaneseq
    %v618 = vshrl.u32 %v617, 7
    %v619 = vsub.s32 0, %v618
    %v620 = vrot.slane %v427, %v619
    %vm621 = vcmask 523264
    %v623 = vsel %vm621, %v616, 0
    %625 = vmatprep.subr.mxu0 0.0
    %626 = vmatpush1.msra.mxu0 %v419
    %627 = vmatprep.subr.mxu0 0.0
    %628 = vmatpush1.msra.mxu0 %v420
    %629 = vmatprep.subr.mxu0 0.0
    %630 = vmatpush1.msra.mxu0 %v421
    %631 = vmatprep.subr.mxu0 0.0
    %632 = vmatpush1.msra.mxu0 %v422
    %633 = vmatprep.subr.mxu0 0.0
    %634 = vmatpush1.msra.mxu0 %v423
    %635 = vmatprep.subr.mxu0 0.0
    %636 = vmatpush1.msra.mxu0 %v424
    %637 = vmatprep.subr.mxu0 0.0
    %638 = vmatpush1.msra.mxu0 %v425
    %639 = vmatprep.subr.mxu0 0.0
    %640 = vmatpush1.msra.mxu0 %v426
    %641 = vmatprep.subr.mxu0 0.0
    %642 = vmatpush1.msra.mxu0 0.0
    %643 = vmatprep.subr.mxu0 0.0
    %644 = vmatpush1.msra.mxu0 0.0
    %645 = vmatprep.subr.mxu0 0.0
    %646 = vmatpush1.msra.mxu0 0.0
    %647 = vmatprep.subr.mxu0 0.0
    %648 = vmatpush1.msra.mxu0 0.0
    %649 = vmatprep.subr.mxu0 0.0
    %650 = vmatpush1.msra.mxu0 0.0
    %651 = vmatprep.subr.mxu0 0.0
    %652 = vmatpush1.msra.mxu0 0.0
    %653 = vmatprep.subr.mxu0 0.0
    %654 = vmatpush1.msra.mxu0 0.0
    %655 = vmatprep.subr.mxu0 0.0
    %656 = vmatpush1.msra.mxu0 0.0
    %657 = vmatprep.subr.mxu0 0.0
    %658 = vmatpush1.msra.mxu0 0.0
    %659 = vmatprep.subr.mxu0 0.0
    %660 = vmatpush1.msra.mxu0 0.0
    %661 = vmatprep.subr.mxu0 0.0
    %662 = vmatpush1.msra.mxu0 0.0
    %663 = vmatprep.subr.mxu0 0.0
    %664 = vmatpush1.msra.mxu0 0.0
    %665 = vmatprep.subr.mxu0 0.0
    %666 = vmatpush1.msra.mxu0 0.0
    %667 = vmatprep.subr.mxu0 0.0
    %668 = vmatpush1.msra.mxu0 0.0
    %669 = vmatprep.subr.mxu0 0.0
    %670 = vmatpush1.msra.mxu0 0.0
    %671 = vmatprep.subr.mxu0 0.0
    %672 = vmatpush1.msra.mxu0 0.0
    %673 = vmatprep.subr.mxu0 0.0
    %674 = vmatpush1.msra.mxu0 0.0
    %675 = vmatprep.subr.mxu0 0.0
    %676 = vmatpush1.msra.mxu0 0.0
    %677 = vmatprep.subr.mxu0 0.0
    %678 = vmatpush1.msra.mxu0 0.0
    %679 = vmatprep.subr.mxu0 0.0
    %680 = vmatpush1.msra.mxu0 0.0
    %681 = vmatprep.subr.mxu0 0.0
    %682 = vmatpush1.msra.mxu0 0.0
    %683 = vmatprep.subr.mxu0 0.0
    %684 = vmatpush1.msra.mxu0 0.0
    %685 = vmatprep.subr.mxu0 0.0
    %686 = vmatpush1.msra.mxu0 0.0
    %687 = vmatprep.subr.mxu0 0.0
    %688 = vmatpush1.msra.mxu0 0.0
    %689 = vmatprep.mubr.f32.mxu0 0.0
    %690 = vmatmul.mubr.f32.gmra.mrb[0].mxu0 %v623
    %v691 = vpop.f32.mrb[0].mxu0
    %v692 = vadd.f32 %v620, %v691
    %v693 = vpop.f32.mrb[0].mxu0
    %694 = vdwg.mxu0
    %v695 = vmax.f32 %v692, 0.0
    %vm696 = vcmask 50176
    %697 = vst.msk [vmem:[#allocation2] sm:$0x3] %vm696, %v695
    // Predicated region
    $region22: #{forward.1} parent=1 // pred_check
      _
    $region23: #{forward.1} parent=1 // pred_check_branch
      %699 = sbr.rel (0) target = $region25
    $region24: #{forward.1} parent=1 // pred_region
      %s701 = ssub.s32 32, 32
      %702 = vsyncadd [#allocation3], %s701
      %s704 = sshll.u32 [#allocation2], 4
      %s705 = int_to_ptr.vmem [resolvable:$true] %s704
      %707 = dma.vmem_to_hbm [thread:$0]  %s705, 32, %s5, [#allocation3]
    $region25: #{forward.1} parent=1 // pred_fallthru
      _
    // Predicated region
    $region26: #{forward.1} parent=1 // pred_check
      _
    $region27: #{forward.1} parent=1 // pred_check_branch
      %709 = sbr.rel (0) target = $region29
    $region28: #{forward.1} parent=1 // pred_region
      %710 = dma.done [#allocation3], 32
    $region29: #{forward.1} parent=1 // pred_fallthru
      _
    %711 = vsyncpa [#allocation3], 1

</llo_original>
